<compile_context>
chip_gen: v7x
topology: tpu7x:2x2x1
jax: 0.10.0
libtpu: 0.0.40
codegen_flags: <defaults>
</compile_context>

<pallas_src>
import functools
import numpy as np

import jax
import jax.numpy as jnp
from jax import lax
from jax.experimental import pallas as pl
from jax.experimental.pallas import tpu as pltpu


# ----------------------------------------------------------------------------
# Prologue kernel: fused projection + RoPE, once per token.
#   w_ref columns = [ Q terms | K terms | V | Q terms (rolled) | K terms (rolled) ]
#   rotation:  qk_rot = base * cos_full + rolled * sin_signed
# ----------------------------------------------------------------------------
def _proj_rope_kernel(x_ref,        # VMEM (1, tp, C)
                      w_ref,        # VMEM (C, 4*n_terms*hs + 2*hs)
                      cos_ref,      # VMEM (tp, 2*n_terms*hs)
                      sin_ref,      # VMEM (tp, 2*n_terms*hs)  (already sign-split)
                      q_ref,        # VMEM (1, n_terms, tp, hs)
                      k_ref,        # VMEM (1, n_terms, tp, hs)
                      v_ref,        # VMEM (1, tp, 2*hs)
                      *, n_terms, hs):
    nh = n_terms * hs
    proj = jnp.dot(x_ref[0], w_ref[...], preferred_element_type=jnp.float32)
    base = proj[:, :2 * nh]                       # un-rotated Q|K terms
    v = proj[:, 2 * nh:2 * nh + 2 * hs]           # V
    rolled = proj[:, 2 * nh + 2 * hs:]            # halves-swapped Q|K terms
    qk_rot = base * cos_ref[...] + rolled * sin_ref[...]
    for i in range(n_terms):                      # static unroll (once per token)
        q_ref[0, i] = qk_rot[:, i * hs:(i + 1) * hs].astype(q_ref.dtype)
        k_ref[0, i] = qk_rot[:, nh + i * hs:nh + (i + 1) * hs].astype(k_ref.dtype)
    v_ref[0] = v.astype(v_ref.dtype)


# ----------------------------------------------------------------------------
# Flash kernel: one (batch, q-tile) per output block, online softmax over kv tiles.
# ----------------------------------------------------------------------------
def _flash_kernel(coef_ref,         # SMEM (n_terms,) f32 : signed lambda coefficients
                  q_ref,            # VMEM (1, n_terms, tq, hs)   rotated+scaled Q
                  k_ref,            # VMEM (1, n_terms, tk, hs)   rotated K
                  v_ref,            # VMEM (1, tk, 2*hs)
                  o_ref,            # VMEM (1, tq, 2*hs)
                  m_sc,             # VMEM (n_terms, tq, 1) f32   running max
                  l_sc,             # VMEM (n_terms, tq, 1) f32   running sum
                  acc_sc,           # VMEM (n_terms, tq, 2*hs) f32  unnormalized PV acc
                  *, n_terms, hs, tq, tk):
    qi = pl.program_id(1)
    ki = pl.program_id(2)
    nk = pl.num_programs(2)
    d_out = 2 * hs

    @pl.when(ki == 0)
    def _():
        m_sc[...] = jnp.full(m_sc.shape, -jnp.inf, dtype=m_sc.dtype)
        l_sc[...] = jnp.zeros(l_sc.shape, dtype=l_sc.dtype)
        acc_sc[...] = jnp.zeros(acc_sc.shape, dtype=acc_sc.dtype)

    first_row = qi * tq
    last_row = first_row + (tq - 1)
    first_col = ki * tk
    last_col = first_col + (tk - 1)

    def online_update(masked):
        v = v_ref[0]                                                    # (tk, 2*hs)
        if masked:
            row_g = first_row + lax.broadcasted_iota(jnp.int32, (tq, tk), 0)
            col_g = first_col + lax.broadcasted_iota(jnp.int32, (tq, tk), 1)
            causal = col_g <= row_g
        for i in range(n_terms):                                        # static unroll
            # (tq, hs) x (tk, hs)^T via trans-b dot_general (no in-kernel transpose)
            s = lax.dot_general(q_ref[0, i], k_ref[0, i],
                                (((1,), (1,)), ((), ())),
                                preferred_element_type=jnp.float32)     # (tq, tk)
            if masked:
                s = jnp.where(causal, s, -jnp.inf)
            m_prev = m_sc[i]
            m_new = jnp.maximum(m_prev, jnp.max(s, axis=-1, keepdims=True))
            alpha = jnp.exp(m_prev - m_new)
            p = jnp.exp(s - m_new)
            l_sc[i] = alpha * l_sc[i] + jnp.sum(p, axis=-1, keepdims=True)
            acc_sc[i] = alpha * acc_sc[i] + jnp.dot(
                p.astype(v.dtype), v, preferred_element_type=jnp.float32)
            m_sc[i] = m_new
            # TODO(synk): attention-map dropout omitted (identity in eval mode).

    # Diagonal-straddling tiles: apply the causal mask.
    @pl.when(jnp.logical_and(first_col <= last_row, last_col > first_row))
    def _():
        online_update(masked=True)

    # Tiles fully below the diagonal: no mask / iota / select work.
    @pl.when(last_col <= first_row)
    def _():
        online_update(masked=False)

    # Tiles fully above the diagonal fall through: no compute here, and no DMA
    # either thanks to the clamped kv index_maps in the wrapper.

    @pl.when(ki == nk - 1)
    def _():
        out = jnp.zeros((tq, d_out), jnp.float32)
        for i in range(n_terms):
            # Exact reciprocal: the signed-lambda combination is sensitive to
            # denominator error (approx=True caused the previous test failure).
            inv_l = 1.0 / l_sc[i]                                       # (tq, 1)
            out = out + (coef_ref[i] * inv_l) * acc_sc[i]
        o_ref[0] = out.astype(o_ref.dtype)


def _vmem_limit_bytes():
    """~80% of physical VMEM (capped at 100 MiB); fallback if query unavailable."""
    try:
        cap = pltpu.get_tpu_info().vmem_capacity_bytes
        return min(int(cap * 0.8), 100 * 1024 * 1024)
    except Exception:
        return 64 * 1024 * 1024


# ----------------------------------------------------------------------------
# Wrapper: weight fusion / RoPE tables / lambda coefficients + the two pallas_calls.
# ----------------------------------------------------------------------------
def alternating_diff_head(x, wq, wk, wv, lambda_qs, lambda_ks, layer_idx,
                          block_size, theta=10000.0, tq=None, tk=None, tp=None,
                          compute_dtype=jnp.bfloat16, out_dtype=None):
    B, T, C = x.shape
    n_terms, hs, _ = wq.shape
    assert hs % 2 == 0
    hs2 = hs // 2
    nh = n_terms * hs
    d_out = 2 * hs
    assert T <= block_size, "sequence length exceeds the RoPE/causal table"

    if tq is None:
        tq = min(T, 256)
    if tk is None:
        tk = min(T, 256)
    if tp is None:
        tp = min(T, 256)
    assert T % tq == 0 and T % tk == 0 and T % tp == 0
    nq, nk = T // tq, T // tk
    if out_dtype is None:
        out_dtype = x.dtype

    vmem_limit = _vmem_limit_bytes()

    # --- RoPE tables, split layout, full width, tiled over the 2*n_terms Q|K segments ---
    freqs = 1.0 / theta ** (jnp.arange(0, hs, 2, dtype=jnp.float32)[:hs2] / hs)
    t_pos = jnp.arange(block_size, dtype=jnp.float32)
    ang = jnp.outer(t_pos, freqs)[:T]                                 # (T, hs/2)
    cos_h, sin_h = jnp.cos(ang), jnp.sin(ang)
    cos_seg = jnp.concatenate([cos_h, cos_h], axis=1)                 # (T, hs)
    sin_seg = jnp.concatenate([-sin_h, sin_h], axis=1)                # (T, hs) signed
    cos_full = jnp.tile(cos_seg, (1, 2 * n_terms)).astype(jnp.float32)
    sin_full = jnp.tile(sin_seg, (1, 2 * n_terms)).astype(jnp.float32)

    # --- fused, split-permuted, pre-transposed projection weights ---
    # Split-permute Q/K output features (even first, then odd): RoPE then acts on
    # contiguous halves; the QK^T dot product is invariant to this shared permutation.
    def split_perm(w):                       # (n_terms, hs, C)
        return jnp.concatenate([w[:, 0::2, :], w[:, 1::2, :]], axis=1)

    scale = 1.0 / hs ** 0.5
    wq_p = split_perm(wq) * scale            # fold 1/sqrt(hs) into the Q weights
    wk_p = split_perm(wk)
    # "Rolled" copies (output features rotated by hs/2) implement the swapped-half
    # term of RoPE directly in the projection — no roll/slice/concat in the kernel.
    wq_r = jnp.roll(wq_p, hs2, axis=1)
    wk_r = jnp.roll(wk_p, hs2, axis=1)

    w_all = jnp.concatenate(
        [wq_p[i].T for i in range(n_terms)]
        + [wk_p[i].T for i in range(n_terms)]
        + [wv.T]
        + [wq_r[i].T for i in range(n_terms)]
        + [wk_r[i].T for i in range(n_terms)], axis=1)                # (C, 4*nh + 2*hs)

    x_c = x.astype(compute_dtype)
    w_all = w_all.astype(compute_dtype)

    # --- pass 1: project + RoPE once per token (no per-q-tile recomputation) ---
    proj_kernel = functools.partial(_proj_rope_kernel, n_terms=n_terms, hs=hs)
    qrot, krot, v = pl.pallas_call(
        proj_kernel,
        out_shape=(jax.ShapeDtypeStruct((B, n_terms, T, hs), compute_dtype),
                   jax.ShapeDtypeStruct((B, n_terms, T, hs), compute_dtype),
                   jax.ShapeDtypeStruct((B, T, d_out), compute_dtype)),
        grid=(B, T // tp),
        in_specs=[
            pl.BlockSpec((1, tp, C), lambda b, t: (b, t, 0)),          # x tile
            pl.BlockSpec((C, 4 * nh + d_out), lambda b, t: (0, 0)),    # fused weights
            pl.BlockSpec((tp, 2 * nh), lambda b, t: (t, 0)),           # cos_full
            pl.BlockSpec((tp, 2 * nh), lambda b, t: (t, 0)),           # sin_signed
        ],
        out_specs=[
            pl.BlockSpec((1, n_terms, tp, hs), lambda b, t: (b, 0, t, 0)),
            pl.BlockSpec((1, n_terms, tp, hs), lambda b, t: (b, 0, t, 0)),
            pl.BlockSpec((1, tp, d_out), lambda b, t: (b, t, 0)),
        ],
        compiler_params=pltpu.CompilerParams(
            dimension_semantics=("parallel", "parallel"),
            vmem_limit_bytes=vmem_limit),
    )(x_c, w_all, cos_full, sin_full)

    # --- signed lambda coefficients (tiny scalar math, plain JAX) ---
    lambda_init = 0.8 - 0.6 * jnp.exp(-0.3 * (jnp.float32(layer_idx) - 1.0))
    lams = []
    for i in range(n_terms):
        lv = jnp.exp(lambda_qs[i] * lambda_ks[i])
        if i > 0:
            lv = lv - jnp.exp(lambda_qs[i - 1] * lambda_ks[i - 1])
        lams.append(jnp.mean(lv + lambda_init))
    signs = [1.0 if i % 2 == 0 else -1.0 for i in range(n_terms)]
    coef = jnp.stack([s * l for s, l in zip(signs, lams)]).astype(jnp.float32)

    # --- pass 2: flash-style differential attention ---
    def kv_block(q, k):
        # Clamp at the last kv tile touching the causal diagonal: skipped steps
        # repeat the previous block index, so their DMA copy is elided.
        return jnp.minimum(k, (q * tq + tq - 1) // tk)

    flash = functools.partial(_flash_kernel, n_terms=n_terms, hs=hs, tq=tq, tk=tk)
    out = pl.pallas_call(
        flash,
        out_shape=jax.ShapeDtypeStruct((B, T, d_out), out_dtype),
        grid=(B, nq, nk),
        in_specs=[
            pl.BlockSpec(memory_space=pltpu.MemorySpace.SMEM),                     # coef
            pl.BlockSpec((1, n_terms, tq, hs), lambda b, q, k: (b, 0, q, 0)),      # Q_rot
            pl.BlockSpec((1, n_terms, tk, hs),
                         lambda b, q, k: (b, 0, kv_block(q, k), 0)),               # K_rot
            pl.BlockSpec((1, tk, d_out),
                         lambda b, q, k: (b, kv_block(q, k), 0)),                  # V
        ],
        out_specs=pl.BlockSpec((1, tq, d_out), lambda b, q, k: (b, q, 0)),
        scratch_shapes=[
            pltpu.VMEM((n_terms, tq, 1), jnp.float32),       # running max m
            pltpu.VMEM((n_terms, tq, 1), jnp.float32),       # running sum l
            pltpu.VMEM((n_terms, tq, d_out), jnp.float32),   # unnormalized PV acc
        ],
        compiler_params=pltpu.CompilerParams(
            dimension_semantics=("parallel", "parallel", "arbitrary"),
            vmem_limit_bytes=vmem_limit),
    )(coef, qrot, krot, v)
    return out


# ----------------------------------------------------------------------------
# Pure-JAX/numpy reference (mirrors the PyTorch module exactly, interleaved RoPE).
# ----------------------------------------------------------------------------
def _ref_forward(x, wq, wk, wv, lambda_qs, lambda_ks, layer_idx, block_size,
                 theta=10000.0):
    B, T, C = x.shape
    n_terms, hs, _ = wq.shape
    hs2 = hs // 2
    freqs = 1.0 / theta ** (np.arange(0, hs, 2, dtype=np.float32)[:hs2] / hs)
    ang = np.outer(np.arange(block_size, dtype=np.float32), freqs)[:T]
    cos_t, sin_t = np.cos(ang), np.sin(ang)

    x = np.asarray(x); wq = np.asarray(wq); wk = np.asarray(wk); wv = np.asarray(wv)
    lambda_qs = np.asarray(lambda_qs); lambda_ks = np.asarray(lambda_ks)

    def rope(z):                              # interleaved complex rotation
        zr, zi = z[..., 0::2], z[..., 1::2]
        orr = zr * cos_t - zi * sin_t
        oii = zr * sin_t + zi * cos_t
        return np.stack([orr, oii], axis=-1).reshape(z.shape)

    v = x @ wv.T
    scale = 1.0 / hs ** 0.5
    tril = np.tril(np.ones((T, T), dtype=bool))
    atts = []
    for i in range(n_terms):
        q = rope(x @ wq[i].T)
        k = rope(x @ wk[i].T)
        att = np.einsum('btd,bsd->bts', q, k) * scale
        att = np.where(tril[None], att, -np.inf)
        att = att - att.max(-1, keepdims=True)
        p = np.exp(att)
        p = p / p.sum(-1, keepdims=True)
        atts.append(p)

    lambda_init = 0.8 - 0.6 * np.exp(-0.3 * (float(layer_idx) - 1.0))
    lams = []
    for i in range(n_terms):
        lv = np.exp(lambda_qs[i] * lambda_ks[i])
        if i > 0:
            lv = lv - np.exp(lambda_qs[i - 1] * lambda_ks[i - 1])
        lams.append(np.mean(lv + lambda_init))
    diff = atts[0] * lams[0]
    for i in range(1, n_terms):
        sign = -1.0 if i % 2 else 1.0
        diff = diff + sign * lams[i] * atts[i]
    return diff @ v


# ----------------------------------------------------------------------------
if __name__ == "__main__":
    # Small shapes; T=32 with tq=tk=tp=16 exercises the prologue tiling, the
    # tiled flash loop, causal tile-skipping (DMA-elided), and multi-tile
    # online-softmax in both f32 and bf16 compute modes.
    B, T, n_embd = 2, 32, 32
    head_size = 32
    block_size = 32
    layer_idx = 3

    key = jax.random.PRNGKey(0)
    k_x, k_q, k_k, k_v, k_lq, k_lk = jax.random.split(key, 6)

    def make_inputs(n_terms):
        x = jax.random.normal(k_x, (B, T, n_embd), dtype=jnp.float32)
        # nn.Linear weights are (out_features, in_features).
        wq = 0.05 * jax.random.normal(k_q, (n_terms, head_size, n_embd), dtype=jnp.float32)
        wk = 0.05 * jax.random.normal(k_k, (n_terms, head_size, n_embd), dtype=jnp.float32)
        wv = 0.05 * jax.random.normal(k_v, (2 * head_size, n_embd), dtype=jnp.float32)
        lambda_qs = 0.1 * jax.random.normal(k_lq, (n_terms, head_size), dtype=jnp.float32)
        lambda_ks = 0.1 * jax.random.normal(k_lk, (n_terms, head_size), dtype=jnp.float32)
        return x, wq, wk, wv, lambda_qs, lambda_ks

    # --- n_terms = 2 : f32 compute (tight check) and bf16 MXU path ---
    args2 = make_inputs(2)
    out_f32 = alternating_diff_head(*args2, layer_idx, block_size,
                                    tq=16, tk=16, tp=16,
                                    compute_dtype=jnp.float32)
    out_f32 = jax.block_until_ready(out_f32)

    out_bf16 = alternating_diff_head(*args2, layer_idx, block_size,
                                     tq=16, tk=16, tp=16,
                                     compute_dtype=jnp.bfloat16)
    out_bf16 = jax.block_until_ready(out_bf16)

    ref2 = _ref_forward(*args2, layer_idx, block_size)
    np.testing.assert_allclose(np.asarray(out_f32), ref2, rtol=1e-3, atol=1e-3)
    np.testing.assert_allclose(np.asarray(out_bf16, dtype=np.float32), ref2,
                               rtol=3e-2, atol=3e-2)

    # --- n_terms = 3 : exercises the alternating signs with an odd term count ---
    args3 = make_inputs(3)
    out3 = alternating_diff_head(*args3, layer_idx, block_size,
                                 tq=16, tk=16, tp=16,
                                 compute_dtype=jnp.float32)
    out3 = jax.block_until_ready(out3)
    ref3 = _ref_forward(*args3, layer_idx, block_size)
    np.testing.assert_allclose(np.asarray(out3), ref3, rtol=1e-3, atol=1e-3)

    print("KERNEL_OK")
</pallas_src>

<mosaic_0001>
module attributes {stable_mosaic.version = 11 : i64} {
  func.func @_proj_rope_kernel(%arg0: i32, %arg1: i32, %arg2: memref<1x16x32xf32, #tpu.memory_space<vmem>>, %arg3: memref<32x320xf32, #tpu.memory_space<vmem>>, %arg4: memref<16x128xf32, #tpu.memory_space<vmem>>, %arg5: memref<16x128xf32, #tpu.memory_space<vmem>>, %arg6: memref<1x2x16x32xf32, #tpu.memory_space<vmem>>, %arg7: memref<1x2x16x32xf32, #tpu.memory_space<vmem>>, %arg8: memref<1x16x64xf32, #tpu.memory_space<vmem>>) attributes {dimension_semantics = [#tpu.dimension_semantics<parallel>, #tpu.dimension_semantics<parallel>], iteration_bounds = array<i64: 2, 2>, scalar_prefetch = 0 : i64, scratch_operands = 0 : i64, tpu.core_type = #tpu.core_type<tc>, window_params = [{transform_indices = @transform_0, window_bounds = array<i64: 1, 16, 32>}, {pipeline_mode = #tpu.pipeline_mode<synchronous>, transform_indices = @transform_1, window_bounds = array<i64: 32, 320>}, {transform_indices = @transform_2, window_bounds = array<i64: 16, 128>}, {transform_indices = @transform_3, window_bounds = array<i64: 16, 128>}, {transform_indices = @transform_4, window_bounds = array<i64: 1, 2, 16, 32>}, {transform_indices = @transform_5, window_bounds = array<i64: 1, 2, 16, 32>}, {transform_indices = @transform_6, window_bounds = array<i64: 1, 16, 64>}]} {
    %c0 = arith.constant 0 : index
    %c0_0 = arith.constant 0 : index
    %c0_1 = arith.constant 0 : index
    %0 = vector.load %arg2[%c0, %c0_0, %c0_1] : memref<1x16x32xf32, #tpu.memory_space<vmem>>, vector<1x16x32xf32>
    %1 = vector.shape_cast %0 : vector<1x16x32xf32> to vector<16x32xf32>
    %c0_2 = arith.constant 0 : index
    %c0_3 = arith.constant 0 : index
    %2 = vector.load %arg3[%c0_2, %c0_3] : memref<32x320xf32, #tpu.memory_space<vmem>>, vector<32x320xf32>
    %cst = arith.constant dense<0.000000e+00> : vector<16x320xf32>
    %3 = tpu.matmul %1, %2, %cst {dimension_numbers = #tpu.dot_dimension_numbers<[1], [0], [0], [1], [0, 0, 1, 1], [], []>} : vector<16x32xf32>, vector<32x320xf32>, vector<16x320xf32> -> vector<16x320xf32>
    %4 = vector.extract_strided_slice %3 {offsets = [0, 0], sizes = [16, 128], strides = [1, 1]} : vector<16x320xf32> to vector<16x128xf32>
    %5 = vector.extract_strided_slice %3 {offsets = [0, 128], sizes = [16, 64], strides = [1, 1]} : vector<16x320xf32> to vector<16x64xf32>
    %6 = vector.extract_strided_slice %3 {offsets = [0, 192], sizes = [16, 128], strides = [1, 1]} : vector<16x320xf32> to vector<16x128xf32>
    %c0_4 = arith.constant 0 : index
    %c0_5 = arith.constant 0 : index
    %7 = vector.load %arg4[%c0_4, %c0_5] : memref<16x128xf32, #tpu.memory_space<vmem>>, vector<16x128xf32>
    %8 = arith.mulf %4, %7 : vector<16x128xf32>
    %c0_6 = arith.constant 0 : index
    %c0_7 = arith.constant 0 : index
    %9 = vector.load %arg5[%c0_6, %c0_7] : memref<16x128xf32, #tpu.memory_space<vmem>>, vector<16x128xf32>
    %10 = arith.mulf %6, %9 : vector<16x128xf32>
    %11 = arith.addf %8, %10 : vector<16x128xf32>
    %12 = vector.extract_strided_slice %11 {offsets = [0, 0], sizes = [16, 32], strides = [1, 1]} : vector<16x128xf32> to vector<16x32xf32>
    %c0_8 = arith.constant 0 : index
    %c0_9 = arith.constant 0 : index
    %c0_10 = arith.constant 0 : index
    %c0_11 = arith.constant 0 : index
    %13 = vector.load %arg6[%c0_8, %c0_9, %c0_10, %c0_11] : memref<1x2x16x32xf32, #tpu.memory_space<vmem>>, vector<1x1x16x32xf32>
    %14 = vector.shape_cast %13 : vector<1x1x16x32xf32> to vector<16x32xf32>
    %15 = vector.shape_cast %12 : vector<16x32xf32> to vector<1x1x16x32xf32>
    tpu.vector_store %arg6[%c0_8, %c0_9, %c0_10, %c0_11], %15 {strides = array<i32>} : memref<1x2x16x32xf32, #tpu.memory_space<vmem>>, vector<1x1x16x32xf32>,
    %16 = vector.extract_strided_slice %11 {offsets = [0, 64], sizes = [16, 32], strides = [1, 1]} : vector<16x128xf32> to vector<16x32xf32>
    %c0_12 = arith.constant 0 : index
    %c0_13 = arith.constant 0 : index
    %c0_14 = arith.constant 0 : index
    %c0_15 = arith.constant 0 : index
    %17 = vector.load %arg7[%c0_12, %c0_13, %c0_14, %c0_15] : memref<1x2x16x32xf32, #tpu.memory_space<vmem>>, vector<1x1x16x32xf32>
    %18 = vector.shape_cast %17 : vector<1x1x16x32xf32> to vector<16x32xf32>
    %19 = vector.shape_cast %16 : vector<16x32xf32> to vector<1x1x16x32xf32>
    tpu.vector_store %arg7[%c0_12, %c0_13, %c0_14, %c0_15], %19 {strides = array<i32>} : memref<1x2x16x32xf32, #tpu.memory_space<vmem>>, vector<1x1x16x32xf32>,
    %20 = vector.extract_strided_slice %11 {offsets = [0, 32], sizes = [16, 32], strides = [1, 1]} : vector<16x128xf32> to vector<16x32xf32>
    %c0_16 = arith.constant 0 : index
    %c1 = arith.constant 1 : index
    %c0_17 = arith.constant 0 : index
    %c0_18 = arith.constant 0 : index
    %21 = vector.load %arg6[%c0_16, %c1, %c0_17, %c0_18] : memref<1x2x16x32xf32, #tpu.memory_space<vmem>>, vector<1x1x16x32xf32>
    %22 = vector.shape_cast %21 : vector<1x1x16x32xf32> to vector<16x32xf32>
    %23 = vector.shape_cast %20 : vector<16x32xf32> to vector<1x1x16x32xf32>
    tpu.vector_store %arg6[%c0_16, %c1, %c0_17, %c0_18], %23 {strides = array<i32>} : memref<1x2x16x32xf32, #tpu.memory_space<vmem>>, vector<1x1x16x32xf32>,
    %24 = vector.extract_strided_slice %11 {offsets = [0, 96], sizes = [16, 32], strides = [1, 1]} : vector<16x128xf32> to vector<16x32xf32>
    %c0_19 = arith.constant 0 : index
    %c1_20 = arith.constant 1 : index
    %c0_21 = arith.constant 0 : index
    %c0_22 = arith.constant 0 : index
    %25 = vector.load %arg7[%c0_19, %c1_20, %c0_21, %c0_22] : memref<1x2x16x32xf32, #tpu.memory_space<vmem>>, vector<1x1x16x32xf32>
    %26 = vector.shape_cast %25 : vector<1x1x16x32xf32> to vector<16x32xf32>
    %27 = vector.shape_cast %24 : vector<16x32xf32> to vector<1x1x16x32xf32>
    tpu.vector_store %arg7[%c0_19, %c1_20, %c0_21, %c0_22], %27 {strides = array<i32>} : memref<1x2x16x32xf32, #tpu.memory_space<vmem>>, vector<1x1x16x32xf32>,
    %c0_23 = arith.constant 0 : index
    %c0_24 = arith.constant 0 : index
    %c0_25 = arith.constant 0 : index
    %28 = vector.load %arg8[%c0_23, %c0_24, %c0_25] : memref<1x16x64xf32, #tpu.memory_space<vmem>>, vector<1x16x64xf32>
    %29 = vector.shape_cast %28 : vector<1x16x64xf32> to vector<16x64xf32>
    %30 = vector.shape_cast %5 : vector<16x64xf32> to vector<1x16x64xf32>
    tpu.vector_store %arg8[%c0_23, %c0_24, %c0_25], %30 {strides = array<i32>} : memref<1x16x64xf32, #tpu.memory_space<vmem>>, vector<1x16x64xf32>,
    return
  }
  func.func @transform_0(%arg0: i32, %arg1: i32) -> (i32, i32, i32) {
    %c0_i32 = arith.constant 0 : i32
    %c0_i32_0 = arith.constant 0 : i32
    return %arg0, %arg1, %c0_i32 : i32, i32, i32
  }
  func.func @transform_1(%arg0: i32, %arg1: i32) -> (i32, i32) {
    %c0_i32 = arith.constant 0 : i32
    %c0_i32_0 = arith.constant 0 : i32
    %c0_i32_1 = arith.constant 0 : i32
    return %c0_i32, %c0_i32_0 : i32, i32
  }
  func.func @transform_2(%arg0: i32, %arg1: i32) -> (i32, i32) {
    %c0_i32 = arith.constant 0 : i32
    %c0_i32_0 = arith.constant 0 : i32
    return %arg1, %c0_i32 : i32, i32
  }
  func.func @transform_3(%arg0: i32, %arg1: i32) -> (i32, i32) {
    %c0_i32 = arith.constant 0 : i32
    %c0_i32_0 = arith.constant 0 : i32
    return %arg1, %c0_i32 : i32, i32
  }
  func.func @transform_4(%arg0: i32, %arg1: i32) -> (i32, i32, i32, i32) {
    %c0_i32 = arith.constant 0 : i32
    %c0_i32_0 = arith.constant 0 : i32
    %c0_i32_1 = arith.constant 0 : i32
    return %arg0, %c0_i32, %arg1, %c0_i32_0 : i32, i32, i32, i32
  }
  func.func @transform_5(%arg0: i32, %arg1: i32) -> (i32, i32, i32, i32) {
    %c0_i32 = arith.constant 0 : i32
    %c0_i32_0 = arith.constant 0 : i32
    %c0_i32_1 = arith.constant 0 : i32
    return %arg0, %c0_i32, %arg1, %c0_i32_0 : i32, i32, i32, i32
  }
  func.func @transform_6(%arg0: i32, %arg1: i32) -> (i32, i32, i32) {
    %c0_i32 = arith.constant 0 : i32
    %c0_i32_0 = arith.constant 0 : i32
    return %arg0, %arg1, %c0_i32 : i32, i32, i32
  }
}

</mosaic_0001>

<llo_original>
// kernel: tpu_custom_call.1
$region0: #{tpu_custom_call.1}
  #allocation0 [shape = 'u32[]', space=smem, size = 0x4, offset = 0x4, fixed_abs, tag = 'smem constant byte address 0x4 - core index']
  #allocation1 [shape = 'u32[144,128]{1,0:T(1,128)}', space=vmem, size = 0x12000, scoped, tag = 'internal scratch']
  #allocation13 [shape = 's32[]', space=sflag, size = 0x4, offset = 0, fixed_abs, tag = 'sflag constant byte address 0x0 - dummy sync flag']
  #allocation15 [shape = 's32[]', space=sflag, size = 0x4, offset = 0, fixed_abs, tag = 'sflag constant byte address 0x0 - dummy sync flag']
  %s0 = inlined_call_operand.hbm [shape: f32[2,32,32], index: 0, kind: input, shape index: {}]
  %s1 = inlined_call_operand.hbm [shape: f32[32,320], index: 1, kind: input, shape index: {}]
  %s2 = inlined_call_operand.hbm [shape: f32[32,128], index: 2, kind: input, shape index: {}]
  %s3 = inlined_call_operand.hbm [shape: f32[32,128], index: 3, kind: input, shape index: {}]
  %s4 = inlined_call_operand.hbm [shape: f32[2,2,32,32], index: 4, kind: output, shape index: {0}]
  %s5 = inlined_call_operand.hbm [shape: f32[2,2,32,32], index: 5, kind: output, shape index: {1}]
  %s6 = inlined_call_operand.hbm [shape: f32[2,32,64], index: 6, kind: output, shape index: {2}]
  %7 = xla_tuple %s4, %s5, %s6
  %s8 = sld [smem:[#allocation0]]
  $region81: #{tpu_custom_call.1} parent=0
    _
  %s10 = ssub.s32 1, %s8
  %s11 = scalar_select 0, %s10, %s8
  $region1: #{tpu_custom_call.1} parent=0
    #allocation2 [shape = 'u8[16384]{0}', space=vmem, size = 0x4000, scoped, tag = 'input window, operand 0']
    #allocation3 [shape = 's32[2]{0}', space=sflag, size = 0x8, scoped, tag = 'scoped memory for tpu_custom_call.1']
    #allocation4 [shape = 's32[2]{0}', space=sflag, size = 0x8, scoped, tag = 'scoped memory for tpu_custom_call.1']
    #allocation5 [shape = 'u8[49152]{0}', space=vmem, size = 0xc000, scoped, tag = 'input window, operand 1, single buffered']
    #allocation6 [shape = 's32[1]{0}', space=sflag, size = 0x4, scoped, tag = 'scoped memory for tpu_custom_call.1']
    #allocation7 [shape = 'u8[16384]{0}', space=vmem, size = 0x4000, scoped, tag = 'input window, operand 2']
    #allocation8 [shape = 'u8[16384]{0}', space=vmem, size = 0x4000, scoped, tag = 'input window, operand 3']
    #allocation9 [shape = 'u8[32768]{0}', space=vmem, size = 0x8000, scoped, tag = 'output window, operand 0']
    #allocation10 [shape = 'u8[32768]{0}', space=vmem, size = 0x8000, scoped, tag = 'output window, operand 1']
    #allocation11 [shape = 's32[2]{0}', space=sflag, size = 0x8, scoped, tag = 'scoped memory for tpu_custom_call.1']
    #allocation12 [shape = 'u8[16384]{0}', space=vmem, size = 0x4000, scoped, tag = 'output window, operand 2']
    %12 = vsyncpa [#allocation3], 0
    %s13 = scalar_lea.sflag [#allocation3], 1
    %14 = vsyncpa %s13, 0
    %15 = vsyncpa [#allocation6], 0
    %16 = vsyncpa [#allocation4], 0
    %s17 = scalar_lea.sflag [#allocation4], 1
    %18 = vsyncpa %s17, 0
    %19 = vsyncpa [#allocation11], 0
    %s20 = scalar_lea.sflag [#allocation11], 1
    %21 = vsyncpa %s20, 0
    loop: start=0, step=1, limit=6
    $region2: #{tpu_custom_call.1} parent=1 // loop_pre_header
      _
    $region3: #{tpu_custom_call.1} parent=1 // loop_header
      %s23 = sphi 0, %s27
      %p24 = scmp.ge.s32.totalorder %s23, 6
      %s30 = sphi 0, %s42
      %s31 = sphi 0, %s38
      %s32 = sphi 0, %s30
      %s33 = sphi 0, %s31
      %s34 = sphi 0, %s32
      %s35 = sphi 0, %s33
      %s47 = sphi 0, %s49
      %s50 = sphi 0, %s47
      %s51 = sphi 0, %s50
      %s67 = sphi 0, %s51
      %s71 = sphi 0, %s71
      %s73 = sphi 0, %s71
      %s74 = sphi 0, %s73
      %s88 = sphi 0, %s74
      %s94 = sphi 0, %s96
      %s97 = sphi 0, %s94
      %s98 = sphi 0, %s97
      %s114 = sphi 0, %s98
      %s120 = sphi 0, %s122
      %s123 = sphi 0, %s120
      %s124 = sphi 0, %s123
      %s140 = sphi 0, %s124
      %s148 = sphi 0, %s150
      %s151 = sphi 0, %s148
      %s152 = sphi 0, %s151
      %s168 = sphi 0, %s152
      %s176 = sphi 0, %s178
      %s179 = sphi 0, %s176
      %s180 = sphi 0, %s179
      %s196 = sphi 0, %s180
      %s204 = sphi 0, %s206
      %s207 = sphi 0, %s204
      %s208 = sphi 0, %s207
      %s224 = sphi 0, %s208
    $region4: #{tpu_custom_call.1} parent=1 // loop_header_branch
      %26 = sbr.rel (%p24) target = $region8
    $region5: #{tpu_custom_call.1} parent=1 // loop_body
      %s28 = ssub.s32 %s23, 1
      %s29 = ssub.s32 %s23, 2
      %s36 = sadd.s32 1, %s31
      %p37 = scmp.ge.s32.totalorder %s36, 2
      %s38 = scalar_select %p37, 0, %s36
      %s39 = sadd.s32 1, %s30
      %s40 = scalar_select %p37, %s39, %s30
      %p41 = scmp.ge.s32.totalorder %s40, 2
      %s42 = scalar_select %p41, 0, %s40
      %s43 = ssub.s32 %s30, %s42
      %s44 = ssub.s32 %s31, %s38
      %s45 = sor.u32 %s43, %s44
      %p46 = scmp.eq.s32.totalorder %s45, 0
      %s48 = sadd.s32 %s47, 1
      %s49 = scalar_select %p46, %s47, %s48
      %p52 = pneg %p46
      %p53 = scmp.eq.s32.totalorder %s23, 3
      %p54 = por %p52, %p53
      %p55 = scmp.ne.s32.totalorder %s47, %s50
      %p56 = scmp.eq.s32.totalorder %s23, 0
      %p57 = por %p55, %p56
      %p58 = scmp.ne.s32.totalorder %s47, %s50
      %p59 = scmp.eq.s32.totalorder %s28, 3
      %p60 = por %p58, %p59
      %p61 = scmp.ne.s32.totalorder %s50, %s51
      %p62 = scmp.eq.s32.totalorder %s28, 0
      %p63 = por %p61, %p62
      %p64 = scmp.ne.s32.totalorder %s50, %s51
      %p65 = scmp.eq.s32.totalorder %s29, 3
      %p66 = por %p64, %p65
      %p68 = scmp.ne.s32.totalorder %s51, %s67
      %p69 = scmp.eq.s32.totalorder %s29, 0
      %p70 = por %p68, %p69
      %s72 = sadd.s32 %s71, 1
      %p75 = scmp.eq.s32.totalorder %s23, 3
      %p76 = scmp.ne.s32.totalorder %s71, %s73
      %p77 = scmp.eq.s32.totalorder %s23, 0
      %p78 = por %p76, %p77
      %p79 = scmp.ne.s32.totalorder %s71, %s73
      %p80 = scmp.eq.s32.totalorder %s28, 3
      %p81 = por %p79, %p80
      %p82 = scmp.ne.s32.totalorder %s73, %s74
      %p83 = scmp.eq.s32.totalorder %s28, 0
      %p84 = por %p82, %p83
      %p85 = scmp.ne.s32.totalorder %s73, %s74
      %p86 = scmp.eq.s32.totalorder %s29, 3
      %p87 = por %p85, %p86
      %p89 = scmp.ne.s32.totalorder %s74, %s88
      %p90 = scmp.eq.s32.totalorder %s29, 0
      %p91 = por %p89, %p90
      %s92 = ssub.s32 %s31, %s38
      %p93 = scmp.eq.s32.totalorder %s92, 0
      %s95 = sadd.s32 %s94, 1
      %s96 = scalar_select %p93, %s94, %s95
      %p99 = pneg %p93
      %p100 = scmp.eq.s32.totalorder %s23, 3
      %p101 = por %p99, %p100
      %p102 = scmp.ne.s32.totalorder %s94, %s97
      %p103 = scmp.eq.s32.totalorder %s23, 0
      %p104 = por %p102, %p103
      %p105 = scmp.ne.s32.totalorder %s94, %s97
      %p106 = scmp.eq.s32.totalorder %s28, 3
      %p107 = por %p105, %p106
      %p108 = scmp.ne.s32.totalorder %s97, %s98
      %p109 = scmp.eq.s32.totalorder %s28, 0
      %p110 = por %p108, %p109
      %p111 = scmp.ne.s32.totalorder %s97, %s98
      %p112 = scmp.eq.s32.totalorder %s29, 3
      %p113 = por %p111, %p112
      %p115 = scmp.ne.s32.totalorder %s98, %s114
      %p116 = scmp.eq.s32.totalorder %s29, 0
      %p117 = por %p115, %p116
      %s118 = ssub.s32 %s31, %s38
      %p119 = scmp.eq.s32.totalorder %s118, 0
      %s121 = sadd.s32 %s120, 1
      %s122 = scalar_select %p119, %s120, %s121
      %p125 = pneg %p119
      %p126 = scmp.eq.s32.totalorder %s23, 3
      %p127 = por %p125, %p126
      %p128 = scmp.ne.s32.totalorder %s120, %s123
      %p129 = scmp.eq.s32.totalorder %s23, 0
      %p130 = por %p128, %p129
      %p131 = scmp.ne.s32.totalorder %s120, %s123
      %p132 = scmp.eq.s32.totalorder %s28, 3
      %p133 = por %p131, %p132
      %p134 = scmp.ne.s32.totalorder %s123, %s124
      %p135 = scmp.eq.s32.totalorder %s28, 0
      %p136 = por %p134, %p135
      %p137 = scmp.ne.s32.totalorder %s123, %s124
      %p138 = scmp.eq.s32.totalorder %s29, 3
      %p139 = por %p137, %p138
      %p141 = scmp.ne.s32.totalorder %s124, %s140
      %p142 = scmp.eq.s32.totalorder %s29, 0
      %p143 = por %p141, %p142
      %s144 = ssub.s32 %s30, %s42
      %s145 = ssub.s32 %s31, %s38
      %s146 = sor.u32 %s144, %s145
      %p147 = scmp.eq.s32.totalorder %s146, 0
      %s149 = sadd.s32 %s148, 1
      %s150 = scalar_select %p147, %s148, %s149
      %p153 = pneg %p147
      %p154 = scmp.eq.s32.totalorder %s23, 3
      %p155 = por %p153, %p154
      %p156 = scmp.ne.s32.totalorder %s148, %s151
      %p157 = scmp.eq.s32.totalorder %s23, 0
      %p158 = por %p156, %p157
      %p159 = scmp.ne.s32.totalorder %s148, %s151
      %p160 = scmp.eq.s32.totalorder %s28, 3
      %p161 = por %p159, %p160
      %p162 = scmp.ne.s32.totalorder %s151, %s152
      %p163 = scmp.eq.s32.totalorder %s28, 0
      %p164 = por %p162, %p163
      %p165 = scmp.ne.s32.totalorder %s151, %s152
      %p166 = scmp.eq.s32.totalorder %s29, 3
      %p167 = por %p165, %p166
      %p169 = scmp.ne.s32.totalorder %s152, %s168
      %p170 = scmp.eq.s32.totalorder %s29, 0
      %p171 = por %p169, %p170
      %s172 = ssub.s32 %s30, %s42
      %s173 = ssub.s32 %s31, %s38
      %s174 = sor.u32 %s172, %s173
      %p175 = scmp.eq.s32.totalorder %s174, 0
      %s177 = sadd.s32 %s176, 1
      %s178 = scalar_select %p175, %s176, %s177
      %p181 = pneg %p175
      %p182 = scmp.eq.s32.totalorder %s23, 3
      %p183 = por %p181, %p182
      %p184 = scmp.ne.s32.totalorder %s176, %s179
      %p185 = scmp.eq.s32.totalorder %s23, 0
      %p186 = por %p184, %p185
      %p187 = scmp.ne.s32.totalorder %s176, %s179
      %p188 = scmp.eq.s32.totalorder %s28, 3
      %p189 = por %p187, %p188
      %p190 = scmp.ne.s32.totalorder %s179, %s180
      %p191 = scmp.eq.s32.totalorder %s28, 0
      %p192 = por %p190, %p191
      %p193 = scmp.ne.s32.totalorder %s179, %s180
      %p194 = scmp.eq.s32.totalorder %s29, 3
      %p195 = por %p193, %p194
      %p197 = scmp.ne.s32.totalorder %s180, %s196
      %p198 = scmp.eq.s32.totalorder %s29, 0
      %p199 = por %p197, %p198
      %s200 = ssub.s32 %s30, %s42
      %s201 = ssub.s32 %s31, %s38
      %s202 = sor.u32 %s200, %s201
      %p203 = scmp.eq.s32.totalorder %s202, 0
      %s205 = sadd.s32 %s204, 1
      %s206 = scalar_select %p203, %s204, %s205
      %p209 = pneg %p203
      %p210 = scmp.eq.s32.totalorder %s23, 3
      %p211 = por %p209, %p210
      %p212 = scmp.ne.s32.totalorder %s204, %s207
      %p213 = scmp.eq.s32.totalorder %s23, 0
      %p214 = por %p212, %p213
      %p215 = scmp.ne.s32.totalorder %s204, %s207
      %p216 = scmp.eq.s32.totalorder %s28, 3
      %p217 = por %p215, %p216
      %p218 = scmp.ne.s32.totalorder %s207, %s208
      %p219 = scmp.eq.s32.totalorder %s28, 0
      %p220 = por %p218, %p219
      %p221 = scmp.ne.s32.totalorder %s207, %s208
      %p222 = scmp.eq.s32.totalorder %s29, 3
      %p223 = por %p221, %p222
      %p225 = scmp.ne.s32.totalorder %s208, %s224
      %p226 = scmp.eq.s32.totalorder %s29, 0
      %p227 = por %p225, %p226
      %p228 = scmp.le.s32.totalorder 1, %s23
      %p229 = scmp.lt.s32.totalorder %s23, 5
      %p230 = pnand %p228, %p229
      %p231 = pneg %p230
      // Predicated region
      $region9: #{tpu_custom_call.1} parent=5 // pred_check
        _
      $region10: #{tpu_custom_call.1} parent=5 // pred_check_branch
        %233 = sbr.rel (%p230) target = $region12
      $region11: #{tpu_custom_call.1} parent=5 // pred_region
        %s234 = ssub.s32 %s23, 1
        // Predicated region
        $region13: #{tpu_custom_call.1} parent=11 // pred_check
          %p235 = pneg %p84
        $region14: #{tpu_custom_call.1} parent=11 // pred_check_branch
          %237 = sbr.rel (%p235) target = $region16
        $region15: #{tpu_custom_call.1} parent=11 // pred_region
          %s239 = ssub.s32 1536, 1536
          %240 = vsyncadd [#allocation6], %s239
          %s241 = sshll.u32 [#allocation5], 4
          %s242 = int_to_ptr.vmem [resolvable:$true] %s241
          %247 = dma.hbm_to_vmem [thread:$0]  %s1, 1536, %s242, [#allocation6], 384, 384, 24
        $region16: #{tpu_custom_call.1} parent=11 // pred_fallthru
          _
      $region12: #{tpu_custom_call.1} parent=5 // pred_fallthru
        _
      %p248 = scmp.lt.s32.totalorder %s23, 4
      // Predicated region
      $region17: #{tpu_custom_call.1} parent=5 // pred_check
        %p249 = pneg %p248
      $region18: #{tpu_custom_call.1} parent=5 // pred_check_branch
        %251 = sbr.rel (%p249) target = $region20
      $region19: #{tpu_custom_call.1} parent=5 // pred_region
        // Predicated region
        $region21: #{tpu_custom_call.1} parent=19 // pred_check
          %p252 = pneg %p57
        $region22: #{tpu_custom_call.1} parent=19 // pred_check_branch
          %254 = sbr.rel (%p252) target = $region24
        $region23: #{tpu_custom_call.1} parent=19 // pred_region
          %s255 = sand.u32 %s23, 1
          %s256 = scalar_lea.sflag [#allocation3], %s255
          %s257 = sand.u32 %s47, 1
          %s258 = smul.addr %s257, 16
          %s259 = scalar_lea.vmem [#allocation2], %s258
          %s260 = smul.u32 2, %s31
          %s262 = ssub.s32 256, 256
          %263 = vsyncadd %s256, %s262
          %s264 = smul.addr %s30, 4
          %s265 = sadd.s32 %s260, %s264
          %s266 = smul.addr %s265, 128
          %s267 = scalar_lea.hbm %s0, %s266
          %s268 = sshll.u32 %s259, 4
          %s269 = int_to_ptr.vmem [resolvable:$true] %s268
          %274 = dma.hbm_to_vmem [thread:$0]  %s267, 256, %s269, %s256, 128, 128, 8
        $region24: #{tpu_custom_call.1} parent=19 // pred_fallthru
          _
        // Predicated region
        $region25: #{tpu_custom_call.1} parent=19 // pred_check
          %p275 = pneg %p104
        $region26: #{tpu_custom_call.1} parent=19 // pred_check_branch
          %277 = sbr.rel (%p275) target = $region28
        $region27: #{tpu_custom_call.1} parent=19 // pred_region
          %s278 = sand.u32 %s23, 1
          %s279 = scalar_lea.sflag [#allocation3], %s278
          %s280 = sand.u32 %s94, 1
          %s281 = smul.addr %s280, 16
          %s282 = scalar_lea.vmem [#allocation7], %s281
          %s283 = smul.u32 2, %s31
          %s285 = ssub.s32 256, 256
          %286 = vsyncadd %s279, %s285
          %s287 = smul.addr %s283, 128
          %s288 = scalar_lea.hbm %s2, %s287
          %s289 = sshll.u32 %s282, 4
          %s290 = int_to_ptr.vmem [resolvable:$true] %s289
          %295 = dma.hbm_to_vmem [thread:$0]  %s288, 256, %s290, %s279, 128, 128, 8
        $region28: #{tpu_custom_call.1} parent=19 // pred_fallthru
          _
        // Predicated region
        $region29: #{tpu_custom_call.1} parent=19 // pred_check
          %p296 = pneg %p130
        $region30: #{tpu_custom_call.1} parent=19 // pred_check_branch
          %298 = sbr.rel (%p296) target = $region32
        $region31: #{tpu_custom_call.1} parent=19 // pred_region
          %s299 = sand.u32 %s23, 1
          %s300 = scalar_lea.sflag [#allocation3], %s299
          %s301 = sand.u32 %s120, 1
          %s302 = smul.addr %s301, 16
          %s303 = scalar_lea.vmem [#allocation8], %s302
          %s304 = smul.u32 2, %s31
          %s306 = ssub.s32 256, 256
          %307 = vsyncadd %s300, %s306
          %s308 = smul.addr %s304, 128
          %s309 = scalar_lea.hbm %s3, %s308
          %s310 = sshll.u32 %s303, 4
          %s311 = int_to_ptr.vmem [resolvable:$true] %s310
          %316 = dma.hbm_to_vmem [thread:$0]  %s309, 256, %s311, %s300, 128, 128, 8
        $region32: #{tpu_custom_call.1} parent=19 // pred_fallthru
          _
      $region20: #{tpu_custom_call.1} parent=5 // pred_fallthru
        _
      %p317 = scmp.le.s32.totalorder 1, %s23
      %p318 = scmp.lt.s32.totalorder %s23, 5
      %p319 = pnand %p317, %p318
      %p320 = pneg %p319
      // Predicated region
      $region33: #{tpu_custom_call.1} parent=5 // pred_check
        _
      $region34: #{tpu_custom_call.1} parent=5 // pred_check_branch
        %322 = sbr.rel (%p319) target = $region36
      $region35: #{tpu_custom_call.1} parent=5 // pred_region
        %s323 = ssub.s32 %s23, 1
        %s324 = sand.u32 %s28, 1
        %s325 = scalar_lea.sflag [#allocation3], %s324
        %s326 = sand.u32 %s50, 1
        %s327 = smul.addr %s326, 16
        %s328 = scalar_lea.vmem [#allocation2], %s327
        // Predicated region
        $region37: #{tpu_custom_call.1} parent=35 // pred_check
          %p329 = pneg %p63
        $region38: #{tpu_custom_call.1} parent=35 // pred_check_branch
          %331 = sbr.rel (%p329) target = $region40
        $region39: #{tpu_custom_call.1} parent=35 // pred_region
          %332 = dma.done %s325, 256
        $region40: #{tpu_custom_call.1} parent=35 // pred_fallthru
          _
        // Predicated region
        $region41: #{tpu_custom_call.1} parent=35 // pred_check
          %p333 = pneg %p84
        $region42: #{tpu_custom_call.1} parent=35 // pred_check_branch
          %335 = sbr.rel (%p333) target = $region44
        $region43: #{tpu_custom_call.1} parent=35 // pred_region
          %336 = dma.done [#allocation6], 1536
        $region44: #{tpu_custom_call.1} parent=35 // pred_fallthru
          _
        %s337 = sand.u32 %s28, 1
        %s338 = scalar_lea.sflag [#allocation3], %s337
        %s339 = sand.u32 %s97, 1
        %s340 = smul.addr %s339, 16
        %s341 = scalar_lea.vmem [#allocation7], %s340
        // Predicated region
        $region45: #{tpu_custom_call.1} parent=35 // pred_check
          %p342 = pneg %p110
        $region46: #{tpu_custom_call.1} parent=35 // pred_check_branch
          %344 = sbr.rel (%p342) target = $region48
        $region47: #{tpu_custom_call.1} parent=35 // pred_region
          %345 = dma.done %s338, 256
        $region48: #{tpu_custom_call.1} parent=35 // pred_fallthru
          _
        %s346 = sand.u32 %s28, 1
        %s347 = scalar_lea.sflag [#allocation3], %s346
        %s348 = sand.u32 %s123, 1
        %s349 = smul.addr %s348, 16
        %s350 = scalar_lea.vmem [#allocation8], %s349
        // Predicated region
        $region49: #{tpu_custom_call.1} parent=35 // pred_check
          %p351 = pneg %p136
        $region50: #{tpu_custom_call.1} parent=35 // pred_check_branch
          %353 = sbr.rel (%p351) target = $region52
        $region51: #{tpu_custom_call.1} parent=35 // pred_region
          %354 = dma.done %s347, 256
        $region52: #{tpu_custom_call.1} parent=35 // pred_fallthru
          _
        %s355 = sand.u32 %s28, 1
        %s356 = scalar_lea.sflag [#allocation3], %s355
        %s357 = sand.u32 %s50, 1
        %s358 = smul.addr %s357, 16
        %s359 = scalar_lea.vmem [#allocation2], %s358
        %p360 = pneg %p63
        %p361 = pneg %p60
        %p362 = pneg %p84
        %p363 = pneg %p81
        %s364 = sand.u32 %s28, 1
        %s365 = scalar_lea.sflag [#allocation3], %s364
        %s366 = sand.u32 %s97, 1
        %s367 = smul.addr %s366, 16
        %s368 = scalar_lea.vmem [#allocation7], %s367
        %p369 = pneg %p110
        %p370 = pneg %p107
        %s371 = sand.u32 %s28, 1
        %s372 = scalar_lea.sflag [#allocation3], %s371
        %s373 = sand.u32 %s123, 1
        %s374 = smul.addr %s373, 16
        %s375 = scalar_lea.vmem [#allocation8], %s374
        %p376 = pneg %p136
        %p377 = pneg %p133
        %p378 = pneg %p164
        %p379 = pneg %p161
        %s380 = sand.u32 %s151, 1
        %s381 = scalar_lea.sflag [#allocation4], %s380
        %s382 = sand.u32 %s151, 1
        %s383 = smul.addr %s382, 32
        %s384 = scalar_lea.vmem [#allocation9], %s383
        %p385 = pneg %p192
        %p386 = pneg %p189
        %s387 = sand.u32 %s28, 1
        %s388 = scalar_lea.sflag [#allocation11], %s387
        %s389 = sand.u32 %s179, 1
        %s390 = smul.addr %s389, 32
        %s391 = scalar_lea.vmem [#allocation10], %s390
        %p392 = pneg %p220
        %p393 = pneg %p217
        %s394 = sand.u32 %s28, 1
        %s395 = scalar_lea.sflag [#allocation11], %s394
        %s396 = sand.u32 %s207, 1
        %s397 = smul.addr %s396, 16
        %s398 = scalar_lea.vmem [#allocation12], %s397
        %s399 = smul.u32 2, %s33
        %s400 = smul.u32 2, %s33
        %s401 = smul.u32 2, %s33
        %s402 = smul.u32 2, %s33
        %s403 = smul.u32 2, %s33
        %s404 = smul.u32 2, %s33
        %v405 = vld [vmem:[%s328] sm:$0xff]
        %v406 = vld [vmem:[%s328 + $0x8] sm:$0xff]
        %v407 = vld [vmem:[#allocation5] sm:$0xff]
        %v408 = vld [vmem:[#allocation5 + $0x8] sm:$0xff]
        %v409 = vld [vmem:[#allocation5 + $0x10] sm:$0xff]
        %v410 = vld [vmem:[#allocation5 + $0x18] sm:$0xff]
        %v411 = vld [vmem:[#allocation5 + $0x20] sm:$0xff]
        %v412 = vld [vmem:[#allocation5 + $0x28] sm:$0xff]
        %v413 = vld [vmem:[#allocation5 + $0x30] sm:$0xff]
        %v414 = vld [vmem:[#allocation5 + $0x38] sm:$0xff]
        %v415 = vld [vmem:[#allocation5 + $0x40] sm:$0xff]
        %v416 = vld [vmem:[#allocation5 + $0x48] sm:$0xff]
        %v417 = vld [vmem:[#allocation5 + $0x50] sm:$0xff]
        %v418 = vld [vmem:[#allocation5 + $0x58] sm:$0xff]
        %vm419 = vcmask 261120
        %v421 = vsel %vm419, %v405, 0
        %v424 = vsel %vm419, %v406, 0
        %426 = vmatprep.subr.mxu0 %v408
        %427 = vmatpush1.msra.mxu0 %v407
        %428 = vmatprep.subr.mxu0 %v411
        %429 = vmatpush1.msra.mxu0 %v410
        %430 = vmatprep.subr.mxu0 %v414
        %431 = vmatpush1.msra.mxu0 %v413
        %432 = vmatprep.subr.mxu0 %v417
        %433 = vmatpush1.msra.mxu0 %v416
        %434 = vmatprep.subr.mxu0 0.0
        %435 = vmatpush1.msra.mxu0 0.0
        %436 = vmatprep.subr.mxu0 0.0
        %437 = vmatpush1.msra.mxu0 0.0
        %438 = vmatprep.subr.mxu0 0.0
        %439 = vmatpush1.msra.mxu0 0.0
        %440 = vmatprep.subr.mxu0 0.0
        %441 = vmatpush1.msra.mxu0 0.0
        %442 = vmatprep.subr.mxu0 0.0
        %443 = vmatpush1.msra.mxu0 0.0
        %444 = vmatprep.subr.mxu0 0.0
        %445 = vmatpush1.msra.mxu0 0.0
        %446 = vmatprep.subr.mxu0 0.0
        %447 = vmatpush1.msra.mxu0 0.0
        %448 = vmatprep.subr.mxu0 0.0
        %449 = vmatpush1.msra.mxu0 0.0
        %450 = vmatprep.subr.mxu0 0.0
        %451 = vmatpush1.msra.mxu0 0.0
        %452 = vmatprep.subr.mxu0 0.0
        %453 = vmatpush1.msra.mxu0 0.0
        %454 = vmatprep.subr.mxu0 0.0
        %455 = vmatpush1.msra.mxu0 0.0
        %456 = vmatprep.subr.mxu0 0.0
        %457 = vmatpush1.msra.mxu0 0.0
        %458 = vmatprep.subr.mxu0 0.0
        %459 = vmatpush1.msra.mxu0 0.0
        %460 = vmatprep.subr.mxu0 0.0
        %461 = vmatpush1.msra.mxu0 0.0
        %462 = vmatprep.subr.mxu0 0.0
        %463 = vmatpush1.msra.mxu0 0.0
        %464 = vmatprep.subr.mxu0 0.0
        %465 = vmatpush1.msra.mxu0 0.0
        %466 = vmatprep.subr.mxu0 0.0
        %467 = vmatpush1.msra.mxu0 0.0
        %468 = vmatprep.subr.mxu0 0.0
        %469 = vmatpush1.msra.mxu0 0.0
        %470 = vmatprep.subr.mxu0 0.0
        %471 = vmatpush1.msra.mxu0 0.0
        %472 = vmatprep.subr.mxu0 0.0
        %473 = vmatpush1.msra.mxu0 0.0
        %474 = vmatprep.subr.mxu0 0.0
        %475 = vmatpush1.msra.mxu0 0.0
        %476 = vmatprep.subr.mxu0 0.0
        %477 = vmatpush1.msra.mxu0 0.0
        %478 = vmatprep.subr.mxu0 0.0
        %479 = vmatpush1.msra.mxu0 0.0
        %480 = vmatprep.subr.mxu0 0.0
        %481 = vmatpush1.msra.mxu0 0.0
        %482 = vmatprep.subr.mxu0 0.0
        %483 = vmatpush1.msra.mxu0 0.0
        %484 = vmatprep.subr.mxu0 0.0
        %485 = vmatpush1.msra.mxu0 0.0
        %486 = vmatprep.subr.mxu0 0.0
        %487 = vmatpush1.msra.mxu0 0.0
        %488 = vmatprep.subr.mxu0 0.0
        %489 = vmatpush1.msra.mxu0 0.0
        %490 = vmatprep.mubr.f32.mxu0 0.0
        %491 = vmatmul.mubr.f32.gmra.mrb[0].mxu0 %v421
        %v492 = vpop.f32.mrb[0].mxu0
        %v493 = vadd.f32 0.0, %v492
        %v494 = vpop.f32.mrb[0].mxu0
        %v495 = vadd.f32 0.0, %v494
        %496 = vmatprep.mubr.f32.mxu0 0.0
        %497 = vmatmul.mubr.f32.gmra.mrb[0].mxu0 %v424
        %v498 = vpop.f32.mrb[0].mxu0
        %v499 = vadd.f32 0.0, %v498
        %v500 = vpop.f32.mrb[0].mxu0
        %v501 = vadd.f32 0.0, %v500
        %502 = vdwg.mxu0
        %503 = vmatprep.subr.mxu0 0.0
        %504 = vmatpush1.msra.mxu0 %v409
        %505 = vmatprep.subr.mxu0 0.0
        %506 = vmatpush1.msra.mxu0 %v412
        %507 = vmatprep.subr.mxu0 0.0
        %508 = vmatpush1.msra.mxu0 %v415
        %509 = vmatprep.subr.mxu0 0.0
        %510 = vmatpush1.msra.mxu0 %v418
        %511 = vmatprep.subr.mxu0 0.0
        %512 = vmatpush1.msra.mxu0 0.0
        %513 = vmatprep.subr.mxu0 0.0
        %514 = vmatpush1.msra.mxu0 0.0
        %515 = vmatprep.subr.mxu0 0.0
        %516 = vmatpush1.msra.mxu0 0.0
        %517 = vmatprep.subr.mxu0 0.0
        %518 = vmatpush1.msra.mxu0 0.0
        %519 = vmatprep.subr.mxu0 0.0
        %520 = vmatpush1.msra.mxu0 0.0
        %521 = vmatprep.subr.mxu0 0.0
        %522 = vmatpush1.msra.mxu0 0.0
        %523 = vmatprep.subr.mxu0 0.0
        %524 = vmatpush1.msra.mxu0 0.0
        %525 = vmatprep.subr.mxu0 0.0
        %526 = vmatpush1.msra.mxu0 0.0
        %527 = vmatprep.subr.mxu0 0.0
        %528 = vmatpush1.msra.mxu0 0.0
        %529 = vmatprep.subr.mxu0 0.0
        %530 = vmatpush1.msra.mxu0 0.0
        %531 = vmatprep.subr.mxu0 0.0
        %532 = vmatpush1.msra.mxu0 0.0
        %533 = vmatprep.subr.mxu0 0.0
        %534 = vmatpush1.msra.mxu0 0.0
        %535 = vmatprep.subr.mxu0 0.0
        %536 = vmatpush1.msra.mxu0 0.0
        %537 = vmatprep.subr.mxu0 0.0
        %538 = vmatpush1.msra.mxu0 0.0
        %539 = vmatprep.subr.mxu0 0.0
        %540 = vmatpush1.msra.mxu0 0.0
        %541 = vmatprep.subr.mxu0 0.0
        %542 = vmatpush1.msra.mxu0 0.0
        %543 = vmatprep.subr.mxu0 0.0
        %544 = vmatpush1.msra.mxu0 0.0
        %545 = vmatprep.subr.mxu0 0.0
        %546 = vmatpush1.msra.mxu0 0.0
        %547 = vmatprep.subr.mxu0 0.0
        %548 = vmatpush1.msra.mxu0 0.0
        %549 = vmatprep.subr.mxu0 0.0
        %550 = vmatpush1.msra.mxu0 0.0
        %551 = vmatprep.subr.mxu0 0.0
        %552 = vmatpush1.msra.mxu0 0.0
        %553 = vmatprep.subr.mxu0 0.0
        %554 = vmatpush1.msra.mxu0 0.0
        %555 = vmatprep.subr.mxu0 0.0
        %556 = vmatpush1.msra.mxu0 0.0
        %557 = vmatprep.subr.mxu0 0.0
        %558 = vmatpush1.msra.mxu0 0.0
        %559 = vmatprep.subr.mxu0 0.0
        %560 = vmatpush1.msra.mxu0 0.0
        %561 = vmatprep.subr.mxu0 0.0
        %562 = vmatpush1.msra.mxu0 0.0
        %563 = vmatprep.subr.mxu0 0.0
        %564 = vmatpush1.msra.mxu0 0.0
        %565 = vmatprep.subr.mxu0 0.0
        %566 = vmatpush1.msra.mxu0 0.0
        %567 = vmatprep.mubr.f32.mxu0 0.0
        %568 = vmatmul.mubr.f32.gmra.mrb[0].mxu0 %v421
        %v569 = vpop.f32.mrb[0].mxu0
        %v570 = vadd.f32 0.0, %v569
        %v571 = vpop.f32.mrb[0].mxu0
        %572 = vmatprep.mubr.f32.mxu0 0.0
        %573 = vmatmul.mubr.f32.gmra.mrb[0].mxu0 %v424
        %v574 = vpop.f32.mrb[0].mxu0
        %v575 = vadd.f32 0.0, %v574
        %v576 = vpop.f32.mrb[0].mxu0
        %577 = vdwg.mxu0
        %v578 = vld [vmem:[%s341] sm:$0xff]
        %v579 = vld [vmem:[%s341 + $0x8] sm:$0xff]
        %v580 = vmul.f32 %v493, %v578
        %v581 = vmul.f32 %v499, %v579
        %v582 = vld [vmem:[%s350] sm:$0xff]
        %v583 = vld [vmem:[%s350 + $0x8] sm:$0xff]
        %586 = vrot.lane.b32.xlu0 %v582, 64
        %v587 = vpop.permute.xlu0 %586
        %588 = vrot.lane.b32.xlu0 %v583, 64
        %v589 = vpop.permute.xlu0 %588
        %v592 = vmul.f32 %v495, %v587
        %v593 = vmul.f32 %v570, %v587
        %v594 = vmul.f32 %v501, %v589
        %v595 = vmul.f32 %v575, %v589
        %600 = vrot.lane.b32.xlu0 %v592, 64
        %v601 = vpop.permute.xlu0 %600
        %602 = vrot.lane.b32.xlu0 %v593, 64
        %v603 = vpop.permute.xlu0 %602
        %604 = vrot.lane.b32.xlu0 %v594, 64
        %v605 = vpop.permute.xlu0 %604
        %606 = vrot.lane.b32.xlu0 %v595, 64
        %v607 = vpop.permute.xlu0 %606
        %vm608 = vcmask 523264
        %v609 = vsel %vm608, %v601, %v603
        %v610 = vsel %vm608, %v605, %v607
        %v613 = vadd.f32 %v580, %v609
        %v614 = vadd.f32 %v581, %v610
        %615 = vst.msk [vmem:[%s384] sm:$0xff] %vm419, %v613
        %616 = vst.msk [vmem:[%s384 + $0x8] sm:$0xff] %vm419, %v614
        %619 = vrot.lane.b32.xlu0 %v613, 64
        %v620 = vpop.permute.xlu0 %619
        %621 = vrot.lane.b32.xlu0 %v614, 64
        %v622 = vpop.permute.xlu0 %621
        %625 = vst.msk [vmem:[%s391] sm:$0xff] %vm419, %v620
        %626 = vst.msk [vmem:[%s391 + $0x8] sm:$0xff] %vm419, %v622
        %627 = vrot.lane.b32.xlu0 %v613, 96
        %v628 = vpop.permute.xlu0 %627
        %629 = vrot.lane.b32.xlu0 %v614, 96
        %v630 = vpop.permute.xlu0 %629
        %s633 = scalar_lea.vmem %s384, 16 [#allocation9]
        %634 = vst.msk [vmem:[%s633] sm:$0xff] %vm419, %v628
        %635 = vst.msk [vmem:[%s633 + $0x8] sm:$0xff] %vm419, %v630
        %636 = vrot.lane.b32.xlu0 %v613, 32
        %v637 = vpop.permute.xlu0 %636
        %638 = vrot.lane.b32.xlu0 %v614, 32
        %v639 = vpop.permute.xlu0 %638
        %s642 = scalar_lea.vmem %s391, 16 [#allocation10]
        %643 = vst.msk [vmem:[%s642] sm:$0xff] %vm419, %v637
        %644 = vst.msk [vmem:[%s642 + $0x8] sm:$0xff] %vm419, %v639
        %645 = vst.msk [vmem:[%s398] sm:$0xff] %vm608, %v495
        %646 = vst.msk [vmem:[%s398 + $0x8] sm:$0xff] %vm608, %v501
        %s647 = sand.u32 %s151, 1
        %s648 = scalar_lea.sflag [#allocation4], %s647
        %s649 = sand.u32 %s151, 1
        %s650 = smul.addr %s649, 32
        %s651 = scalar_lea.vmem [#allocation9], %s650
        %s652 = sand.u32 %s28, 1
        %s653 = scalar_lea.sflag [#allocation11], %s652
        %s654 = sand.u32 %s179, 1
        %s655 = smul.addr %s654, 32
        %s656 = scalar_lea.vmem [#allocation10], %s655
        %s657 = sand.u32 %s28, 1
        %s658 = scalar_lea.sflag [#allocation11], %s657
        %s659 = sand.u32 %s207, 1
        %s660 = smul.addr %s659, 16
        %s661 = scalar_lea.vmem [#allocation12], %s660
        // Predicated region
        $region53: #{tpu_custom_call.1} parent=35 // pred_check
          %p662 = pneg %p161
        $region54: #{tpu_custom_call.1} parent=35 // pred_check_branch
          %664 = sbr.rel (%p662) target = $region56
        $region55: #{tpu_custom_call.1} parent=35 // pred_region
          #allocation14 [shape = 'u32[6]{0}', space=smem, size = 0x18, scoped, tag = 'DMA stride descriptor']
          %s665 = smul.u32 2, %s33
          %s667 = ssub.s32 512, 512
          %668 = vsyncadd %s648, %s667
          %s669 = smul.addr %s32, 8
          %s670 = sadd.s32 %s665, %s669
          %s671 = smul.addr %s670, 128
          %s672 = scalar_lea.hbm %s4, %s671
          %s674 = sshll.u32 1, 14
          %s675 = sxor.u32 4294967295, %s674
          %s678 = sshll.u32 7, 18
          %s679 = sxor.u32 4294967295, %s678
          %s680 = sand.u32 0, %s679
          %s682 = sor.u32 %s680, 0
          %s684 = sshll.u32 3, 24
          %s685 = sxor.u32 4294967295, %s684
          %s686 = sand.u32 %s682, %s685
          %s688 = sor.u32 %s686, 0
          %s689 = sshll.u32 %s651, 4
          %s690 = int_to_ptr.vmem [resolvable:$true] %s689
          %696 = sst [smem:[#allocation14]] 256
          %s697 = scalar_lea.smem [#allocation14], 1
          %698 = sst [smem:[%s697]] 512
          %s699 = scalar_lea.smem [#allocation14], 2
          %700 = sst [smem:[%s699]] 2
          %s701 = scalar_lea.smem [#allocation14], 3
          %702 = sst [smem:[%s701]] 128
          %s703 = scalar_lea.smem [#allocation14], 4
          %704 = sst [smem:[%s703]] 128
          %s705 = scalar_lea.smem [#allocation14], 5
          %706 = sst [smem:[%s705]] 8
          %708 = dma.general %s690, 512, %s672, %s648, [#allocation13], [#allocation14], %s688, 0
        $region56: #{tpu_custom_call.1} parent=35 // pred_fallthru
          _
        // Predicated region
        $region57: #{tpu_custom_call.1} parent=35 // pred_check
          %p709 = pneg %p189
        $region58: #{tpu_custom_call.1} parent=35 // pred_check_branch
          %711 = sbr.rel (%p709) target = $region60
        $region59: #{tpu_custom_call.1} parent=35 // pred_region
          #allocation16 [shape = 'u32[6]{0}', space=smem, size = 0x18, scoped, tag = 'DMA stride descriptor']
          %s712 = smul.u32 2, %s33
          %s714 = ssub.s32 512, 512
          %715 = vsyncadd %s653, %s714
          %s716 = smul.addr %s32, 8
          %s717 = sadd.s32 %s712, %s716
          %s718 = smul.addr %s717, 128
          %s719 = scalar_lea.hbm %s5, %s718
          %s721 = sshll.u32 1, 14
          %s722 = sxor.u32 4294967295, %s721
          %s725 = sshll.u32 7, 18
          %s726 = sxor.u32 4294967295, %s725
          %s727 = sand.u32 0, %s726
          %s729 = sor.u32 %s727, 0
          %s731 = sshll.u32 3, 24
          %s732 = sxor.u32 4294967295, %s731
          %s733 = sand.u32 %s729, %s732
          %s735 = sor.u32 %s733, 0
          %s736 = sshll.u32 %s656, 4
          %s737 = int_to_ptr.vmem [resolvable:$true] %s736
          %743 = sst [smem:[#allocation16]] 256
          %s744 = scalar_lea.smem [#allocation16], 1
          %745 = sst [smem:[%s744]] 512
          %s746 = scalar_lea.smem [#allocation16], 2
          %747 = sst [smem:[%s746]] 2
          %s748 = scalar_lea.smem [#allocation16], 3
          %749 = sst [smem:[%s748]] 128
          %s750 = scalar_lea.smem [#allocation16], 4
          %751 = sst [smem:[%s750]] 128
          %s752 = scalar_lea.smem [#allocation16], 5
          %753 = sst [smem:[%s752]] 8
          %755 = dma.general %s737, 512, %s719, %s653, [#allocation15], [#allocation16], %s735, 0
        $region60: #{tpu_custom_call.1} parent=35 // pred_fallthru
          _
        // Predicated region
        $region61: #{tpu_custom_call.1} parent=35 // pred_check
          %p756 = pneg %p217
        $region62: #{tpu_custom_call.1} parent=35 // pred_check_branch
          %758 = sbr.rel (%p756) target = $region64
        $region63: #{tpu_custom_call.1} parent=35 // pred_region
          %s759 = smul.u32 2, %s33
          %s761 = ssub.s32 256, 256
          %762 = vsyncadd %s658, %s761
          %s763 = smul.addr %s32, 4
          %s764 = sadd.s32 %s759, %s763
          %s765 = smul.addr %s764, 128
          %s766 = scalar_lea.hbm %s6, %s765
          %s767 = sshll.u32 %s661, 4
          %s768 = int_to_ptr.vmem [resolvable:$true] %s767
          %773 = dma.vmem_to_hbm [thread:$0]  %s768, 256, %s766, %s658, 128, 128, 8
        $region64: #{tpu_custom_call.1} parent=35 // pred_fallthru
          _
      $region36: #{tpu_custom_call.1} parent=5 // pred_fallthru
        _
      %p774 = scmp.le.s32.totalorder 2, %s23
      // Predicated region
      $region65: #{tpu_custom_call.1} parent=5 // pred_check
        %p775 = pneg %p774
      $region66: #{tpu_custom_call.1} parent=5 // pred_check_branch
        %777 = sbr.rel (%p775) target = $region68
      $region67: #{tpu_custom_call.1} parent=5 // pred_region
        %s778 = ssub.s32 %s23, 2
        // Predicated region
        $region69: #{tpu_custom_call.1} parent=67 // pred_check
          %p779 = pneg %p167
        $region70: #{tpu_custom_call.1} parent=67 // pred_check_branch
          %781 = sbr.rel (%p779) target = $region72
        $region71: #{tpu_custom_call.1} parent=67 // pred_region
          %s782 = sand.u32 %s152, 1
          %s783 = scalar_lea.sflag [#allocation4], %s782
          %s784 = sand.u32 %s152, 1
          %s785 = smul.addr %s784, 32
          %s786 = scalar_lea.vmem [#allocation9], %s785
          %787 = dma.done %s783, 512
        $region72: #{tpu_custom_call.1} parent=67 // pred_fallthru
          _
        // Predicated region
        $region73: #{tpu_custom_call.1} parent=67 // pred_check
          %p788 = pneg %p195
        $region74: #{tpu_custom_call.1} parent=67 // pred_check_branch
          %790 = sbr.rel (%p788) target = $region76
        $region75: #{tpu_custom_call.1} parent=67 // pred_region
          %s791 = sand.u32 %s29, 1
          %s792 = scalar_lea.sflag [#allocation11], %s791
          %s793 = sand.u32 %s180, 1
          %s794 = smul.addr %s793, 32
          %s795 = scalar_lea.vmem [#allocation10], %s794
          %796 = dma.done %s792, 512
        $region76: #{tpu_custom_call.1} parent=67 // pred_fallthru
          _
        // Predicated region
        $region77: #{tpu_custom_call.1} parent=67 // pred_check
          %p797 = pneg %p223
        $region78: #{tpu_custom_call.1} parent=67 // pred_check_branch
          %799 = sbr.rel (%p797) target = $region80
        $region79: #{tpu_custom_call.1} parent=67 // pred_region
          %s800 = sand.u32 %s29, 1
          %s801 = scalar_lea.sflag [#allocation11], %s800
          %s802 = sand.u32 %s208, 1
          %s803 = smul.addr %s802, 16
          %s804 = scalar_lea.vmem [#allocation12], %s803
          %805 = dma.done %s801, 256
        $region80: #{tpu_custom_call.1} parent=67 // pred_fallthru
          _
      $region68: #{tpu_custom_call.1} parent=5 // pred_fallthru
        _
    $region6: #{tpu_custom_call.1} parent=1 // loop_footer
      %s27 = sadd.s32 1, %s23
    $region7: #{tpu_custom_call.1} parent=1 // loop_footer_branch
      %22 = sbr.rel target = $region3
    $region8: #{tpu_custom_call.1} parent=1 // loop_exit
      _
    %806 = vsyncpa [#allocation3], 1
    %s807 = scalar_lea.sflag [#allocation3], 1
    %808 = vsyncpa %s807, 1
    %809 = vsyncpa [#allocation6], 1
    %810 = vsyncpa [#allocation4], 1
    %s811 = scalar_lea.sflag [#allocation4], 1
    %812 = vsyncpa %s811, 1
    %813 = vsyncpa [#allocation11], 1
    %s814 = scalar_lea.sflag [#allocation11], 1
    %815 = vsyncpa %s814, 1

</llo_original>
